<compile_context>
chip_gen: v5e
topology: v5e:2x2
jax: 0.10.0
libtpu: 0.0.40
codegen_flags: <defaults>
</compile_context>

<pallas_src>
import functools

import jax
import jax.numpy as jnp
import numpy as np
from jax.experimental import pallas as pl
from jax.experimental.pallas import tpu as pltpu

_MXU = jnp.bfloat16  # MXU operand dtype; accumulation stays f32 via preferred_element_type.


def _round_up(n, m):
    return ((n + m - 1) // m) * m


def init_params(key, D, H, L, C, init_logvar=-3.0):
    """PyTorch-style Linear init (uniform +/- 1/sqrt(fan_in)); raw (un-fused) weights."""
    ks = list(jax.random.split(key, 10))

    def lin(kw, kb, fan_in, fan_out):
        bound = 1.0 / np.sqrt(fan_in)
        w = jax.random.uniform(kw, (fan_in, fan_out), jnp.float32, -bound, bound)
        b = jax.random.uniform(kb, (1, fan_out), jnp.float32, -bound, bound)
        return w, b

    w_e1, b_e1 = lin(ks[0], ks[1], D + C, H)      # Encoder Linear(D+C -> H)
    w_mu, b_mu = lin(ks[2], ks[3], H, L)          # enc_mean_layer
    w_lv, b_lv = lin(ks[4], ks[5], H, L)          # enc_logvar_layer
    w_d1, b_d1 = lin(ks[6], ks[7], L + C, H)      # Decoder Linear(L+C -> H)
    w_dm, b_dm = lin(ks[8], ks[9], H, D)          # decoder_mean_layer

    return {
        "w_e1": w_e1, "b_e1": b_e1,
        "w_mu": w_mu, "b_mu": b_mu,
        "w_lv": w_lv, "b_lv": b_lv,
        "w_d1": w_d1, "b_d1": b_d1,
        "w_dm": w_dm, "b_dm": b_dm,
        "logvar_out": jnp.full((1, D), init_logvar, jnp.float32),
    }


def prepare_params(raw, D, H, L, C):
    """One-time fusion/packing of the raw weights into kernel-ready operands (bf16 MXU
    weights, f32 biases).  Done once outside the jitted forward."""
    w_e1, w_d1 = raw["w_e1"], raw["w_d1"]

    # First fused layer, N = 2H wide.  Result lane layout: [c_contrib + b_d1 | h1].
    w_x = jnp.concatenate([jnp.zeros((D, H), jnp.float32), w_e1[:D]], axis=1)      # (D, 2H)
    w_c = jnp.concatenate([w_d1[L:], w_e1[D:]], axis=1)                            # (C, 2H)
    b_big = jnp.concatenate([raw["b_d1"], raw["b_e1"]], axis=1)                    # (1, 2H)

    # Fused mu|logvar heads; zero rows for the c_contrib lanes so the full `big`
    # feeds the MXU without a lane slice.
    w_heads = jnp.concatenate([raw["w_mu"], raw["w_lv"]], axis=1)                  # (H, 2L)
    w_heads_big = jnp.concatenate(
        [jnp.zeros((H, 2 * L), jnp.float32), w_heads], axis=0)                     # (2H, 2L)
    b_heads = jnp.concatenate([raw["b_mu"], raw["b_lv"]], axis=1)                  # (1, 2L)

    return {
        "w_x": w_x.astype(_MXU),
        "w_c": w_c.astype(_MXU),
        "b_big": b_big,
        "w_heads": w_heads_big.astype(_MXU),
        "b_heads": b_heads,
        "w_d1z": w_d1[:L].astype(_MXU),          # (L, H)
        "w_dm": raw["w_dm"].astype(_MXU),        # (H, D)
        "b_dm": raw["b_dm"],
        "logvar_out": raw["logvar_out"],
    }


def cvae_forward(kp, x, c, eps, *, batch_tile=128):
    """cVAE forward.  Returns dict with x_recon (loc, scale), mu, logvar, z.

    `eps` stands in for torch.randn_like(mu) inside reparameterise (passed explicitly
    so the kernel is deterministic).
    """
    B, D = x.shape
    C = c.shape[1]
    L = eps.shape[1]
    H = kp["w_d1z"].shape[1]

    # Batched activation streams go to the kernel in bf16; eps stays f32 for the
    # elementwise reparameterise.
    x = x.astype(_MXU)
    c = c.astype(_MXU)
    eps = eps.astype(jnp.float32)

    # Tile the batch.  Keep >= 2 grid steps per TensorCore on v7x; raise batch_tile for
    # larger batches (multiple of 256 on v6e/v7x, 128 on v5e).
    tb = min(batch_tile, B)
    Bp = B
    if B % tb != 0:  # pad only when it actually fires
        Bp = _round_up(B, tb)
        pad = ((0, Bp - B), (0, 0))
        x, c, eps = jnp.pad(x, pad), jnp.pad(c, pad), jnp.pad(eps, pad)
    grid = (Bp // tb,)

    # Pack loc | mu|logvar (heads) | z into one lane-dense output slab (width >= 128).
    packed = D + 3 * L
    out_w = max(128, _round_up(packed, 128))
    pad_w = out_w - packed

    def kernel(x_ref, c_ref, eps_ref,
               w_x_ref, w_c_ref, b_big_ref,
               w_heads_ref, b_heads_ref,
               w_d1z_ref, w_dm_ref, b_dm_ref,
               out_ref):
        # Fused first layer (N = 2H lanes):
        #   lanes [0, H)  : c @ w_d1c + b_d1   (decoder conditioning contribution)
        #   lanes [H, 2H) : (x|c) @ w_e1 + b_e1 = h1   (encoder hidden, non_linear=False)
        big = (jnp.dot(x_ref[...], w_x_ref[...], preferred_element_type=jnp.float32)
               + jnp.dot(c_ref[...], w_c_ref[...], preferred_element_type=jnp.float32)
               + b_big_ref[...])

        # Fused mu|logvar heads: K = 2H with zero rows on the c_contrib lanes, so the
        # full `big` feeds the MXU (no lane slice on the matmul input).
        heads = (jnp.dot(big.astype(_MXU), w_heads_ref[...],
                         preferred_element_type=jnp.float32) + b_heads_ref[...])
        mu = heads[:, :L]
        logvar = heads[:, L:]

        # Reparameterise (f32 elementwise / EUP): z = mu + eps * exp(0.5 * logvar).
        z = mu + eps_ref[...] * jnp.exp(0.5 * logvar)

        # Decoder hidden layer: z @ w_d1z + (c @ w_d1c + b_d1)  (prefix lane slice).
        xr = (jnp.dot(z.astype(_MXU), w_d1z_ref[...],
                      preferred_element_type=jnp.float32) + big[:, :H])

        # Decoder mean head -> loc of the output Normal.
        loc = (jnp.dot(xr.astype(_MXU), w_dm_ref[...],
                       preferred_element_type=jnp.float32) + b_dm_ref[...])

        # Single lane-dense (tb, out_w) store: loc | heads (mu|logvar) | z | zero-pad.
        pieces = [loc, heads, z]
        if pad_w:
            pieces.append(jnp.zeros((loc.shape[0], pad_w), jnp.float32))
        out_ref[...] = jnp.concatenate(pieces, axis=1)

    batched = lambda feat: pl.BlockSpec((tb, feat), lambda i: (i, 0))
    full = lambda shape: pl.BlockSpec(shape, lambda i: (0, 0))

    out = pl.pallas_call(
        kernel,
        out_shape=jax.ShapeDtypeStruct((Bp, out_w), jnp.float32),
        grid_spec=pltpu.PrefetchScalarGridSpec(
            num_scalar_prefetch=0,
            grid=grid,
            in_specs=[
                batched(D),              # x   (bf16)
                batched(C),              # c   (bf16)
                batched(L),              # eps (f32)
                full((D, 2 * H)),        # w_x     (bf16)
                full((C, 2 * H)),        # w_c     (bf16)
                full((1, 2 * H)),        # b_big = [b_d1 | b_e1] (f32)
                full((2 * H, 2 * L)),    # w_heads (bf16, zero rows for c_contrib lanes)
                full((1, 2 * L)),        # b_heads (f32)
                full((L, H)),            # w_d1z   (bf16)
                full((H, D)),            # w_dm    (bf16)
                full((1, D)),            # b_dm    (f32)
            ],
            out_specs=pl.BlockSpec((tb, out_w), lambda i: (i, 0)),
        ),
        compiler_params=pltpu.CompilerParams(
            dimension_semantics=("parallel",),
            vmem_limit_bytes=32 * 1024 * 1024),
    )(x, c, eps,
      kp["w_x"], kp["w_c"], kp["b_big"],
      kp["w_heads"], kp["b_heads"],
      kp["w_d1z"], kp["w_dm"], kp["b_dm"])

    loc = out[:B, :D]
    mu = out[:B, D:D + L]
    logvar = out[:B, D + L:D + 2 * L]
    z = out[:B, D + 2 * L:D + 3 * L]

    # Normal scale = logvar_out.exp().pow(0.5) — a (1, D) parameter; trivial glue outside.
    recon_scale = jnp.exp(0.5 * kp["logvar_out"])

    return {"x_recon_loc": loc, "x_recon_scale": recon_scale,
            "mu": mu, "logvar": logvar, "z": z}


def _reference_forward(raw, x, c, eps, *, use_bf16):
    """Pure-JAX mirror of the PyTorch forward on raw weights.  use_bf16=True mirrors the
    kernel's MXU feed (bf16 operands, f32 accumulation); False is exact f32 module math."""
    mxu = jnp.bfloat16 if use_bf16 else jnp.float32
    xc = jnp.concatenate([x, c], axis=1).astype(mxu)
    h1 = jnp.dot(xc, raw["w_e1"].astype(mxu),
                 preferred_element_type=jnp.float32) + raw["b_e1"]
    h1m = h1.astype(mxu)
    mu = jnp.dot(h1m, raw["w_mu"].astype(mxu),
                 preferred_element_type=jnp.float32) + raw["b_mu"]
    logvar = jnp.dot(h1m, raw["w_lv"].astype(mxu),
                     preferred_element_type=jnp.float32) + raw["b_lv"]
    z = mu + eps * jnp.exp(0.5 * logvar)
    zc = jnp.concatenate([z.astype(mxu), c.astype(mxu)], axis=1)
    xr = jnp.dot(zc, raw["w_d1"].astype(mxu),
                 preferred_element_type=jnp.float32) + raw["b_d1"]
    loc = jnp.dot(xr.astype(mxu), raw["w_dm"].astype(mxu),
                  preferred_element_type=jnp.float32) + raw["b_dm"]
    return loc, mu, logvar, z


if __name__ == "__main__":
    # input_dim=32, hidden_dim=[64], latent_dim=16, c_dim=8.
    # B=512 with batch_tile=128 -> grid=(4,): >= 2 grid steps per TensorCore on v7x.
    B, D, H, L, C = 512, 32, 64, 16, 8

    key = jax.random.PRNGKey(0)
    k_par, k_x, k_c, k_eps = jax.random.split(key, 4)

    raw = init_params(k_par, D, H, L, C)
    kp = prepare_params(raw, D, H, L, C)   # one-time fusion, outside the jitted forward

    x = jax.random.normal(k_x, (B, D), jnp.float32)
    c = jax.random.normal(k_c, (B, C), jnp.float32)       # conditioning vector (float)
    eps = jax.random.normal(k_eps, (B, L), jnp.float32)   # stands in for torch.randn_like(mu)

    fwd = jax.jit(functools.partial(cvae_forward, batch_tile=128))
    out = fwd(kp, x, c, eps)
    jax.block_until_ready(out)

    # 1) Check against a pure-JAX mirror of the kernel math (bf16 operands, f32 accum).
    r_loc, r_mu, r_lv, r_z = _reference_forward(raw, x, c, eps, use_bf16=True)
    np.testing.assert_allclose(np.asarray(out["mu"]), np.asarray(r_mu), rtol=5e-3, atol=5e-3)
    np.testing.assert_allclose(np.asarray(out["logvar"]), np.asarray(r_lv), rtol=5e-3, atol=5e-3)
    np.testing.assert_allclose(np.asarray(out["z"]), np.asarray(r_z), rtol=5e-3, atol=5e-3)
    np.testing.assert_allclose(np.asarray(out["x_recon_loc"]), np.asarray(r_loc), rtol=5e-3, atol=5e-3)

    # 2) Loose check against exact-f32 math (the PyTorch module semantics);
    #    tolerance sized for bf16 operand quantization.
    f_loc, f_mu, f_lv, f_z = _reference_forward(raw, x, c, eps, use_bf16=False)
    np.testing.assert_allclose(np.asarray(out["mu"]), np.asarray(f_mu), rtol=1e-1, atol=1e-1)
    np.testing.assert_allclose(np.asarray(out["logvar"]), np.asarray(f_lv), rtol=1e-1, atol=1e-1)
    np.testing.assert_allclose(np.asarray(out["z"]), np.asarray(f_z), rtol=1e-1, atol=1e-1)
    np.testing.assert_allclose(np.asarray(out["x_recon_loc"]), np.asarray(f_loc), rtol=1e-1, atol=1e-1)

    np.testing.assert_allclose(np.asarray(out["x_recon_scale"]),
                               np.exp(0.5 * np.asarray(raw["logvar_out"])), rtol=1e-6)

    # TODO(synk): loss_function (KL + Normal log-prob) and the Adam optimizer step are not
    # ported; only the forward pass is implemented as a Pallas kernel.
    print("KERNEL_OK")
</pallas_src>

<mosaic_0001>
module attributes {stable_mosaic.version = 11 : i64} {
  func.func @kernel(%arg0: i32, %arg1: memref<128x32xbf16, #tpu.memory_space<vmem>>, %arg2: memref<128x8xbf16, #tpu.memory_space<vmem>>, %arg3: memref<128x16xf32, #tpu.memory_space<vmem>>, %arg4: memref<32x128xbf16, #tpu.memory_space<vmem>>, %arg5: memref<8x128xbf16, #tpu.memory_space<vmem>>, %arg6: memref<1x128xf32, #tpu.memory_space<vmem>>, %arg7: memref<128x32xbf16, #tpu.memory_space<vmem>>, %arg8: memref<1x32xf32, #tpu.memory_space<vmem>>, %arg9: memref<16x64xbf16, #tpu.memory_space<vmem>>, %arg10: memref<64x32xbf16, #tpu.memory_space<vmem>>, %arg11: memref<1x32xf32, #tpu.memory_space<vmem>>, %arg12: memref<128x128xf32, #tpu.memory_space<vmem>>) attributes {dimension_semantics = [#tpu.dimension_semantics<parallel>], iteration_bounds = array<i64: 4>, scalar_prefetch = 0 : i64, scratch_operands = 0 : i64, tpu.core_type = #tpu.core_type<tc>, window_params = [{transform_indices = @transform_0, window_bounds = array<i64: 128, 32>}, {transform_indices = @transform_1, window_bounds = array<i64: 128, 8>}, {transform_indices = @transform_2, window_bounds = array<i64: 128, 16>}, {pipeline_mode = #tpu.pipeline_mode<synchronous>, transform_indices = @transform_3, window_bounds = array<i64: 32, 128>}, {pipeline_mode = #tpu.pipeline_mode<synchronous>, transform_indices = @transform_4, window_bounds = array<i64: 8, 128>}, {pipeline_mode = #tpu.pipeline_mode<synchronous>, transform_indices = @transform_5, window_bounds = array<i64: 1, 128>}, {pipeline_mode = #tpu.pipeline_mode<synchronous>, transform_indices = @transform_6, window_bounds = array<i64: 128, 32>}, {pipeline_mode = #tpu.pipeline_mode<synchronous>, transform_indices = @transform_7, window_bounds = array<i64: 1, 32>}, {pipeline_mode = #tpu.pipeline_mode<synchronous>, transform_indices = @transform_8, window_bounds = array<i64: 16, 64>}, {pipeline_mode = #tpu.pipeline_mode<synchronous>, transform_indices = @transform_9, window_bounds = array<i64: 64, 32>}, {pipeline_mode = #tpu.pipeline_mode<synchronous>, transform_indices = @transform_10, window_bounds = array<i64: 1, 32>}, {transform_indices = @transform_11, window_bounds = array<i64: 128, 128>}]} {
    %c0 = arith.constant 0 : index
    %c0_0 = arith.constant 0 : index
    %0 = vector.load %arg1[%c0, %c0_0] : memref<128x32xbf16, #tpu.memory_space<vmem>>, vector<128x32xbf16>
    %c0_1 = arith.constant 0 : index
    %c0_2 = arith.constant 0 : index
    %1 = vector.load %arg4[%c0_1, %c0_2] : memref<32x128xbf16, #tpu.memory_space<vmem>>, vector<32x128xbf16>
    %cst = arith.constant dense<0.000000e+00> : vector<128x128xf32>
    %2 = tpu.matmul %0, %1, %cst {dimension_numbers = #tpu.dot_dimension_numbers<[1], [0], [0], [1], [0, 0, 1, 1], [], []>} : vector<128x32xbf16>, vector<32x128xbf16>, vector<128x128xf32> -> vector<128x128xf32>
    %c0_3 = arith.constant 0 : index
    %c0_4 = arith.constant 0 : index
    %3 = vector.load %arg2[%c0_3, %c0_4] : memref<128x8xbf16, #tpu.memory_space<vmem>>, vector<128x8xbf16>
    %c0_5 = arith.constant 0 : index
    %c0_6 = arith.constant 0 : index
    %4 = vector.load %arg5[%c0_5, %c0_6] : memref<8x128xbf16, #tpu.memory_space<vmem>>, vector<8x128xbf16>
    %cst_7 = arith.constant dense<0.000000e+00> : vector<128x128xf32>
    %5 = tpu.matmul %3, %4, %cst_7 {dimension_numbers = #tpu.dot_dimension_numbers<[1], [0], [0], [1], [0, 0, 1, 1], [], []>} : vector<128x8xbf16>, vector<8x128xbf16>, vector<128x128xf32> -> vector<128x128xf32>
    %6 = arith.addf %2, %5 : vector<128x128xf32>
    %c0_8 = arith.constant 0 : index
    %c0_9 = arith.constant 0 : index
    %7 = vector.load %arg6[%c0_8, %c0_9] : memref<1x128xf32, #tpu.memory_space<vmem>>, vector<1x128xf32>
    %8 = vector.broadcast %7 : vector<1x128xf32> to vector<128x128xf32>
    %9 = arith.addf %6, %8 : vector<128x128xf32>
    %10 = arith.truncf %9 : vector<128x128xf32> to vector<128x128xbf16>
    %c0_10 = arith.constant 0 : index
    %c0_11 = arith.constant 0 : index
    %11 = vector.load %arg7[%c0_10, %c0_11] : memref<128x32xbf16, #tpu.memory_space<vmem>>, vector<128x32xbf16>
    %cst_12 = arith.constant dense<0.000000e+00> : vector<128x32xf32>
    %12 = tpu.matmul %10, %11, %cst_12 {dimension_numbers = #tpu.dot_dimension_numbers<[1], [0], [0], [1], [0, 0, 1, 1], [], []>} : vector<128x128xbf16>, vector<128x32xbf16>, vector<128x32xf32> -> vector<128x32xf32>
    %c0_13 = arith.constant 0 : index
    %c0_14 = arith.constant 0 : index
    %13 = vector.load %arg8[%c0_13, %c0_14] : memref<1x32xf32, #tpu.memory_space<vmem>>, vector<1x32xf32>
    %14 = vector.broadcast %13 : vector<1x32xf32> to vector<128x32xf32>
    %15 = arith.addf %12, %14 : vector<128x32xf32>
    %16 = vector.extract_strided_slice %15 {offsets = [0, 0], sizes = [128, 16], strides = [1, 1]} : vector<128x32xf32> to vector<128x16xf32>
    %17 = vector.extract_strided_slice %15 {offsets = [0, 16], sizes = [128, 16], strides = [1, 1]} : vector<128x32xf32> to vector<128x16xf32>
    %c0_15 = arith.constant 0 : index
    %c0_16 = arith.constant 0 : index
    %18 = vector.load %arg3[%c0_15, %c0_16] : memref<128x16xf32, #tpu.memory_space<vmem>>, vector<128x16xf32>
    %cst_17 = arith.constant 5.000000e-01 : f32
    %19 = vector.broadcast %cst_17 : f32 to vector<128x16xf32>
    %20 = arith.mulf %19, %17 : vector<128x16xf32>
    %21 = math.exp %20 : vector<128x16xf32>
    %22 = arith.mulf %18, %21 : vector<128x16xf32>
    %23 = arith.addf %16, %22 : vector<128x16xf32>
    %24 = arith.truncf %23 : vector<128x16xf32> to vector<128x16xbf16>
    %c0_18 = arith.constant 0 : index
    %c0_19 = arith.constant 0 : index
    %25 = vector.load %arg9[%c0_18, %c0_19] : memref<16x64xbf16, #tpu.memory_space<vmem>>, vector<16x64xbf16>
    %cst_20 = arith.constant dense<0.000000e+00> : vector<128x64xf32>
    %26 = tpu.matmul %24, %25, %cst_20 {dimension_numbers = #tpu.dot_dimension_numbers<[1], [0], [0], [1], [0, 0, 1, 1], [], []>} : vector<128x16xbf16>, vector<16x64xbf16>, vector<128x64xf32> -> vector<128x64xf32>
    %27 = vector.extract_strided_slice %9 {offsets = [0, 0], sizes = [128, 64], strides = [1, 1]} : vector<128x128xf32> to vector<128x64xf32>
    %28 = arith.addf %26, %27 : vector<128x64xf32>
    %29 = arith.truncf %28 : vector<128x64xf32> to vector<128x64xbf16>
    %c0_21 = arith.constant 0 : index
    %c0_22 = arith.constant 0 : index
    %30 = vector.load %arg10[%c0_21, %c0_22] : memref<64x32xbf16, #tpu.memory_space<vmem>>, vector<64x32xbf16>
    %cst_23 = arith.constant dense<0.000000e+00> : vector<128x32xf32>
    %31 = tpu.matmul %29, %30, %cst_23 {dimension_numbers = #tpu.dot_dimension_numbers<[1], [0], [0], [1], [0, 0, 1, 1], [], []>} : vector<128x64xbf16>, vector<64x32xbf16>, vector<128x32xf32> -> vector<128x32xf32>
    %c0_24 = arith.constant 0 : index
    %c0_25 = arith.constant 0 : index
    %32 = vector.load %arg11[%c0_24, %c0_25] : memref<1x32xf32, #tpu.memory_space<vmem>>, vector<1x32xf32>
    %33 = vector.broadcast %32 : vector<1x32xf32> to vector<128x32xf32>
    %34 = arith.addf %31, %33 : vector<128x32xf32>
    %cst_26 = arith.constant 0.000000e+00 : f32
    %35 = vector.broadcast %cst_26 : f32 to vector<128x48xf32>
    %36 = tpu.concatenate %34, %15, %23, %35 in 1 : vector<128x32xf32>, vector<128x32xf32>, vector<128x16xf32>, vector<128x48xf32> -> vector<128x128xf32>
    %c0_27 = arith.constant 0 : index
    %c0_28 = arith.constant 0 : index
    %37 = vector.load %arg12[%c0_27, %c0_28] : memref<128x128xf32, #tpu.memory_space<vmem>>, vector<128x128xf32>
    tpu.vector_store %arg12[%c0_27, %c0_28], %36 {strides = array<i32>} : memref<128x128xf32, #tpu.memory_space<vmem>>, vector<128x128xf32>,
    return
  }
  func.func @transform_0(%arg0: i32) -> (i32, i32) {
    %c0_i32 = arith.constant 0 : i32
    %c0_i32_0 = arith.constant 0 : i32
    return %arg0, %c0_i32 : i32, i32
  }
  func.func @transform_1(%arg0: i32) -> (i32, i32) {
    %c0_i32 = arith.constant 0 : i32
    %c0_i32_0 = arith.constant 0 : i32
    return %arg0, %c0_i32 : i32, i32
  }
  func.func @transform_2(%arg0: i32) -> (i32, i32) {
    %c0_i32 = arith.constant 0 : i32
    %c0_i32_0 = arith.constant 0 : i32
    return %arg0, %c0_i32 : i32, i32
  }
  func.func @transform_3(%arg0: i32) -> (i32, i32) {
    %c0_i32 = arith.constant 0 : i32
    %c0_i32_0 = arith.constant 0 : i32
    %c0_i32_1 = arith.constant 0 : i32
    return %c0_i32, %c0_i32_0 : i32, i32
  }
  func.func @transform_4(%arg0: i32) -> (i32, i32) {
    %c0_i32 = arith.constant 0 : i32
    %c0_i32_0 = arith.constant 0 : i32
    %c0_i32_1 = arith.constant 0 : i32
    return %c0_i32, %c0_i32_0 : i32, i32
  }
  func.func @transform_5(%arg0: i32) -> (i32, i32) {
    %c0_i32 = arith.constant 0 : i32
    %c0_i32_0 = arith.constant 0 : i32
    %c0_i32_1 = arith.constant 0 : i32
    return %c0_i32, %c0_i32_0 : i32, i32
  }
  func.func @transform_6(%arg0: i32) -> (i32, i32) {
    %c0_i32 = arith.constant 0 : i32
    %c0_i32_0 = arith.constant 0 : i32
    %c0_i32_1 = arith.constant 0 : i32
    return %c0_i32, %c0_i32_0 : i32, i32
  }
  func.func @transform_7(%arg0: i32) -> (i32, i32) {
    %c0_i32 = arith.constant 0 : i32
    %c0_i32_0 = arith.constant 0 : i32
    %c0_i32_1 = arith.constant 0 : i32
    return %c0_i32, %c0_i32_0 : i32, i32
  }
  func.func @transform_8(%arg0: i32) -> (i32, i32) {
    %c0_i32 = arith.constant 0 : i32
    %c0_i32_0 = arith.constant 0 : i32
    %c0_i32_1 = arith.constant 0 : i32
    return %c0_i32, %c0_i32_0 : i32, i32
  }
  func.func @transform_9(%arg0: i32) -> (i32, i32) {
    %c0_i32 = arith.constant 0 : i32
    %c0_i32_0 = arith.constant 0 : i32
    %c0_i32_1 = arith.constant 0 : i32
    return %c0_i32, %c0_i32_0 : i32, i32
  }
  func.func @transform_10(%arg0: i32) -> (i32, i32) {
    %c0_i32 = arith.constant 0 : i32
    %c0_i32_0 = arith.constant 0 : i32
    %c0_i32_1 = arith.constant 0 : i32
    return %c0_i32, %c0_i32_0 : i32, i32
  }
  func.func @transform_11(%arg0: i32) -> (i32, i32) {
    %c0_i32 = arith.constant 0 : i32
    %c0_i32_0 = arith.constant 0 : i32
    return %arg0, %c0_i32 : i32, i32
  }
}

</mosaic_0001>

<llo_original>
// kernel: cvae_forward.1
$region0: #{cvae_forward.1}
  #allocation0 [shape = 'u32[]', space=smem, size = 0x4, offset = 0x4, fixed_abs, tag = 'smem constant byte address 0x4 - core index']
  #allocation1 [shape = 'u32[72,128]{1,0:T(1,128)}', space=vmem, size = 0x9000, scoped, tag = 'internal scratch']
  %s0 = inlined_call_operand.vmem [shape: bf16[512,32], index: 0, kind: input, shape index: {}]
  %s1 = inlined_call_operand.vmem [shape: bf16[512,8], index: 1, kind: input, shape index: {}]
  %s2 = inlined_call_operand.vmem [shape: f32[512,16], index: 2, kind: input, shape index: {}]
  %s3 = inlined_call_operand.vmem [shape: bf16[32,128], index: 3, kind: input, shape index: {}]
  %s4 = inlined_call_operand.vmem [shape: bf16[8,128], index: 4, kind: input, shape index: {}]
  %s5 = inlined_call_operand.vmem [shape: f32[1,128], index: 5, kind: input, shape index: {}]
  %s6 = inlined_call_operand.vmem [shape: bf16[128,32], index: 6, kind: input, shape index: {}]
  %s7 = inlined_call_operand.vmem [shape: f32[1,32], index: 7, kind: input, shape index: {}]
  %s8 = inlined_call_operand.vmem [shape: bf16[16,64], index: 8, kind: input, shape index: {}]
  %s9 = inlined_call_operand.vmem [shape: bf16[64,32], index: 9, kind: input, shape index: {}]
  %s10 = inlined_call_operand.vmem [shape: f32[1,32], index: 10, kind: input, shape index: {}]
  %s11 = inlined_call_operand.vmem [shape: f32[512,128], index: 11, kind: output, shape index: {}]
  %s12 = sld [smem:[#allocation0]]
  $region77: #{cvae_forward.1} parent=0
    _
  %s14 = ssub.s32 1, %s12
  %s15 = scalar_select 0, %s14, %s12
  loop: start=0, step=1, limit=6
  $region2: #{cvae_forward.1} parent=0 // loop_pre_header
    _
  $region3: #{cvae_forward.1} parent=0 // loop_header
    %s17 = sphi 0, %s21
    %p18 = scmp.ge.s32.totalorder %s17, 6
    %s27 = sphi 0, %s29
    %s30 = sphi 0, %s27
    %s31 = sphi 0, %s30
    %s47 = sphi 0, %s31
    %s53 = sphi 0, %s55
    %s56 = sphi 0, %s53
    %s57 = sphi 0, %s56
    %s73 = sphi 0, %s57
    %s79 = sphi 0, %s81
    %s82 = sphi 0, %s79
    %s83 = sphi 0, %s82
    %s99 = sphi 0, %s83
    %s103 = sphi 0, %s103
    %s105 = sphi 0, %s103
    %s106 = sphi 0, %s105
    %s120 = sphi 0, %s106
    %s124 = sphi 0, %s124
    %s126 = sphi 0, %s124
    %s127 = sphi 0, %s126
    %s141 = sphi 0, %s127
    %s145 = sphi 0, %s145
    %s147 = sphi 0, %s145
    %s148 = sphi 0, %s147
    %s162 = sphi 0, %s148
    %s166 = sphi 0, %s166
    %s168 = sphi 0, %s166
    %s169 = sphi 0, %s168
    %s183 = sphi 0, %s169
    %s187 = sphi 0, %s187
    %s189 = sphi 0, %s187
    %s190 = sphi 0, %s189
    %s204 = sphi 0, %s190
    %s208 = sphi 0, %s208
    %s210 = sphi 0, %s208
    %s211 = sphi 0, %s210
    %s225 = sphi 0, %s211
    %s229 = sphi 0, %s229
    %s231 = sphi 0, %s229
    %s232 = sphi 0, %s231
    %s246 = sphi 0, %s232
    %s250 = sphi 0, %s250
    %s252 = sphi 0, %s250
    %s253 = sphi 0, %s252
    %s267 = sphi 0, %s253
    %s273 = sphi 0, %s275
    %s276 = sphi 0, %s273
    %s277 = sphi 0, %s276
    %s293 = sphi 0, %s277
  $region4: #{cvae_forward.1} parent=0 // loop_header_branch
    %20 = sbr.rel (%p18) target = $region8
  $region5: #{cvae_forward.1} parent=0 // loop_body
    %s22 = ssub.s32 %s17, 1
    %s23 = ssub.s32 %s17, 2
    %s24 = sadd.s32 %s17, 1
    %s25 = ssub.s32 %s17, %s24
    %p26 = scmp.eq.s32.totalorder %s25, 0
    %s28 = sadd.s32 %s27, 1
    %s29 = scalar_select %p26, %s27, %s28
    %p32 = pneg %p26
    %p33 = scmp.eq.s32.totalorder %s17, 3
    %p34 = por %p32, %p33
    %p35 = scmp.ne.s32.totalorder %s27, %s30
    %p36 = scmp.eq.s32.totalorder %s17, 0
    %p37 = por %p35, %p36
    %p38 = scmp.ne.s32.totalorder %s27, %s30
    %p39 = scmp.eq.s32.totalorder %s22, 3
    %p40 = por %p38, %p39
    %p41 = scmp.ne.s32.totalorder %s30, %s31
    %p42 = scmp.eq.s32.totalorder %s22, 0
    %p43 = por %p41, %p42
    %p44 = scmp.ne.s32.totalorder %s30, %s31
    %p45 = scmp.eq.s32.totalorder %s23, 3
    %p46 = por %p44, %p45
    %p48 = scmp.ne.s32.totalorder %s31, %s47
    %p49 = scmp.eq.s32.totalorder %s23, 0
    %p50 = por %p48, %p49
    %s51 = ssub.s32 %s17, %s24
    %p52 = scmp.eq.s32.totalorder %s51, 0
    %s54 = sadd.s32 %s53, 1
    %s55 = scalar_select %p52, %s53, %s54
    %p58 = pneg %p52
    %p59 = scmp.eq.s32.totalorder %s17, 3
    %p60 = por %p58, %p59
    %p61 = scmp.ne.s32.totalorder %s53, %s56
    %p62 = scmp.eq.s32.totalorder %s17, 0
    %p63 = por %p61, %p62
    %p64 = scmp.ne.s32.totalorder %s53, %s56
    %p65 = scmp.eq.s32.totalorder %s22, 3
    %p66 = por %p64, %p65
    %p67 = scmp.ne.s32.totalorder %s56, %s57
    %p68 = scmp.eq.s32.totalorder %s22, 0
    %p69 = por %p67, %p68
    %p70 = scmp.ne.s32.totalorder %s56, %s57
    %p71 = scmp.eq.s32.totalorder %s23, 3
    %p72 = por %p70, %p71
    %p74 = scmp.ne.s32.totalorder %s57, %s73
    %p75 = scmp.eq.s32.totalorder %s23, 0
    %p76 = por %p74, %p75
    %s77 = ssub.s32 %s17, %s24
    %p78 = scmp.eq.s32.totalorder %s77, 0
    %s80 = sadd.s32 %s79, 1
    %s81 = scalar_select %p78, %s79, %s80
    %p84 = pneg %p78
    %p85 = scmp.eq.s32.totalorder %s17, 3
    %p86 = por %p84, %p85
    %p87 = scmp.ne.s32.totalorder %s79, %s82
    %p88 = scmp.eq.s32.totalorder %s17, 0
    %p89 = por %p87, %p88
    %p90 = scmp.ne.s32.totalorder %s79, %s82
    %p91 = scmp.eq.s32.totalorder %s22, 3
    %p92 = por %p90, %p91
    %p93 = scmp.ne.s32.totalorder %s82, %s83
    %p94 = scmp.eq.s32.totalorder %s22, 0
    %p95 = por %p93, %p94
    %p96 = scmp.ne.s32.totalorder %s82, %s83
    %p97 = scmp.eq.s32.totalorder %s23, 3
    %p98 = por %p96, %p97
    %p100 = scmp.ne.s32.totalorder %s83, %s99
    %p101 = scmp.eq.s32.totalorder %s23, 0
    %p102 = por %p100, %p101
    %s104 = sadd.s32 %s103, 1
    %p107 = scmp.eq.s32.totalorder %s17, 3
    %p108 = scmp.ne.s32.totalorder %s103, %s105
    %p109 = scmp.eq.s32.totalorder %s17, 0
    %p110 = por %p108, %p109
    %p111 = scmp.ne.s32.totalorder %s103, %s105
    %p112 = scmp.eq.s32.totalorder %s22, 3
    %p113 = por %p111, %p112
    %p114 = scmp.ne.s32.totalorder %s105, %s106
    %p115 = scmp.eq.s32.totalorder %s22, 0
    %p116 = por %p114, %p115
    %p117 = scmp.ne.s32.totalorder %s105, %s106
    %p118 = scmp.eq.s32.totalorder %s23, 3
    %p119 = por %p117, %p118
    %p121 = scmp.ne.s32.totalorder %s106, %s120
    %p122 = scmp.eq.s32.totalorder %s23, 0
    %p123 = por %p121, %p122
    %s125 = sadd.s32 %s124, 1
    %p128 = scmp.eq.s32.totalorder %s17, 3
    %p129 = scmp.ne.s32.totalorder %s124, %s126
    %p130 = scmp.eq.s32.totalorder %s17, 0
    %p131 = por %p129, %p130
    %p132 = scmp.ne.s32.totalorder %s124, %s126
    %p133 = scmp.eq.s32.totalorder %s22, 3
    %p134 = por %p132, %p133
    %p135 = scmp.ne.s32.totalorder %s126, %s127
    %p136 = scmp.eq.s32.totalorder %s22, 0
    %p137 = por %p135, %p136
    %p138 = scmp.ne.s32.totalorder %s126, %s127
    %p139 = scmp.eq.s32.totalorder %s23, 3
    %p140 = por %p138, %p139
    %p142 = scmp.ne.s32.totalorder %s127, %s141
    %p143 = scmp.eq.s32.totalorder %s23, 0
    %p144 = por %p142, %p143
    %s146 = sadd.s32 %s145, 1
    %p149 = scmp.eq.s32.totalorder %s17, 3
    %p150 = scmp.ne.s32.totalorder %s145, %s147
    %p151 = scmp.eq.s32.totalorder %s17, 0
    %p152 = por %p150, %p151
    %p153 = scmp.ne.s32.totalorder %s145, %s147
    %p154 = scmp.eq.s32.totalorder %s22, 3
    %p155 = por %p153, %p154
    %p156 = scmp.ne.s32.totalorder %s147, %s148
    %p157 = scmp.eq.s32.totalorder %s22, 0
    %p158 = por %p156, %p157
    %p159 = scmp.ne.s32.totalorder %s147, %s148
    %p160 = scmp.eq.s32.totalorder %s23, 3
    %p161 = por %p159, %p160
    %p163 = scmp.ne.s32.totalorder %s148, %s162
    %p164 = scmp.eq.s32.totalorder %s23, 0
    %p165 = por %p163, %p164
    %s167 = sadd.s32 %s166, 1
    %p170 = scmp.eq.s32.totalorder %s17, 3
    %p171 = scmp.ne.s32.totalorder %s166, %s168
    %p172 = scmp.eq.s32.totalorder %s17, 0
    %p173 = por %p171, %p172
    %p174 = scmp.ne.s32.totalorder %s166, %s168
    %p175 = scmp.eq.s32.totalorder %s22, 3
    %p176 = por %p174, %p175
    %p177 = scmp.ne.s32.totalorder %s168, %s169
    %p178 = scmp.eq.s32.totalorder %s22, 0
    %p179 = por %p177, %p178
    %p180 = scmp.ne.s32.totalorder %s168, %s169
    %p181 = scmp.eq.s32.totalorder %s23, 3
    %p182 = por %p180, %p181
    %p184 = scmp.ne.s32.totalorder %s169, %s183
    %p185 = scmp.eq.s32.totalorder %s23, 0
    %p186 = por %p184, %p185
    %s188 = sadd.s32 %s187, 1
    %p191 = scmp.eq.s32.totalorder %s17, 3
    %p192 = scmp.ne.s32.totalorder %s187, %s189
    %p193 = scmp.eq.s32.totalorder %s17, 0
    %p194 = por %p192, %p193
    %p195 = scmp.ne.s32.totalorder %s187, %s189
    %p196 = scmp.eq.s32.totalorder %s22, 3
    %p197 = por %p195, %p196
    %p198 = scmp.ne.s32.totalorder %s189, %s190
    %p199 = scmp.eq.s32.totalorder %s22, 0
    %p200 = por %p198, %p199
    %p201 = scmp.ne.s32.totalorder %s189, %s190
    %p202 = scmp.eq.s32.totalorder %s23, 3
    %p203 = por %p201, %p202
    %p205 = scmp.ne.s32.totalorder %s190, %s204
    %p206 = scmp.eq.s32.totalorder %s23, 0
    %p207 = por %p205, %p206
    %s209 = sadd.s32 %s208, 1
    %p212 = scmp.eq.s32.totalorder %s17, 3
    %p213 = scmp.ne.s32.totalorder %s208, %s210
    %p214 = scmp.eq.s32.totalorder %s17, 0
    %p215 = por %p213, %p214
    %p216 = scmp.ne.s32.totalorder %s208, %s210
    %p217 = scmp.eq.s32.totalorder %s22, 3
    %p218 = por %p216, %p217
    %p219 = scmp.ne.s32.totalorder %s210, %s211
    %p220 = scmp.eq.s32.totalorder %s22, 0
    %p221 = por %p219, %p220
    %p222 = scmp.ne.s32.totalorder %s210, %s211
    %p223 = scmp.eq.s32.totalorder %s23, 3
    %p224 = por %p222, %p223
    %p226 = scmp.ne.s32.totalorder %s211, %s225
    %p227 = scmp.eq.s32.totalorder %s23, 0
    %p228 = por %p226, %p227
    %s230 = sadd.s32 %s229, 1
    %p233 = scmp.eq.s32.totalorder %s17, 3
    %p234 = scmp.ne.s32.totalorder %s229, %s231
    %p235 = scmp.eq.s32.totalorder %s17, 0
    %p236 = por %p234, %p235
    %p237 = scmp.ne.s32.totalorder %s229, %s231
    %p238 = scmp.eq.s32.totalorder %s22, 3
    %p239 = por %p237, %p238
    %p240 = scmp.ne.s32.totalorder %s231, %s232
    %p241 = scmp.eq.s32.totalorder %s22, 0
    %p242 = por %p240, %p241
    %p243 = scmp.ne.s32.totalorder %s231, %s232
    %p244 = scmp.eq.s32.totalorder %s23, 3
    %p245 = por %p243, %p244
    %p247 = scmp.ne.s32.totalorder %s232, %s246
    %p248 = scmp.eq.s32.totalorder %s23, 0
    %p249 = por %p247, %p248
    %s251 = sadd.s32 %s250, 1
    %p254 = scmp.eq.s32.totalorder %s17, 3
    %p255 = scmp.ne.s32.totalorder %s250, %s252
    %p256 = scmp.eq.s32.totalorder %s17, 0
    %p257 = por %p255, %p256
    %p258 = scmp.ne.s32.totalorder %s250, %s252
    %p259 = scmp.eq.s32.totalorder %s22, 3
    %p260 = por %p258, %p259
    %p261 = scmp.ne.s32.totalorder %s252, %s253
    %p262 = scmp.eq.s32.totalorder %s22, 0
    %p263 = por %p261, %p262
    %p264 = scmp.ne.s32.totalorder %s252, %s253
    %p265 = scmp.eq.s32.totalorder %s23, 3
    %p266 = por %p264, %p265
    %p268 = scmp.ne.s32.totalorder %s253, %s267
    %p269 = scmp.eq.s32.totalorder %s23, 0
    %p270 = por %p268, %p269
    %s271 = ssub.s32 %s17, %s24
    %p272 = scmp.eq.s32.totalorder %s271, 0
    %s274 = sadd.s32 %s273, 1
    %s275 = scalar_select %p272, %s273, %s274
    %p278 = pneg %p272
    %p279 = scmp.eq.s32.totalorder %s17, 3
    %p280 = por %p278, %p279
    %p281 = scmp.ne.s32.totalorder %s273, %s276
    %p282 = scmp.eq.s32.totalorder %s17, 0
    %p283 = por %p281, %p282
    %p284 = scmp.ne.s32.totalorder %s273, %s276
    %p285 = scmp.eq.s32.totalorder %s22, 3
    %p286 = por %p284, %p285
    %p287 = scmp.ne.s32.totalorder %s276, %s277
    %p288 = scmp.eq.s32.totalorder %s22, 0
    %p289 = por %p287, %p288
    %p290 = scmp.ne.s32.totalorder %s276, %s277
    %p291 = scmp.eq.s32.totalorder %s23, 3
    %p292 = por %p290, %p291
    %p294 = scmp.ne.s32.totalorder %s277, %s293
    %p295 = scmp.eq.s32.totalorder %s23, 0
    %p296 = por %p294, %p295
    %p297 = scmp.le.s32.totalorder 1, %s17
    %p298 = scmp.lt.s32.totalorder %s17, 5
    %p299 = pnand %p297, %p298
    %p300 = pneg %p299
    // Predicated region
    $region9: #{cvae_forward.1} parent=5 // pred_check
      _
    $region10: #{cvae_forward.1} parent=5 // pred_check_branch
      %302 = sbr.rel (%p299) target = $region12
    $region11: #{cvae_forward.1} parent=5 // pred_region
      %s303 = ssub.s32 %s17, 1
      // Predicated region
      $region13: #{cvae_forward.1} parent=11 // pred_check
        %p304 = pneg %p116
      $region14: #{cvae_forward.1} parent=11 // pred_check_branch
        %306 = sbr.rel (%p304) target = $region16
      $region15: #{cvae_forward.1} parent=11 // pred_region
        _
      $region16: #{cvae_forward.1} parent=11 // pred_fallthru
        _
      // Predicated region
      $region17: #{cvae_forward.1} parent=11 // pred_check
        %p307 = pneg %p137
      $region18: #{cvae_forward.1} parent=11 // pred_check_branch
        %309 = sbr.rel (%p307) target = $region20
      $region19: #{cvae_forward.1} parent=11 // pred_region
        _
      $region20: #{cvae_forward.1} parent=11 // pred_fallthru
        _
      // Predicated region
      $region21: #{cvae_forward.1} parent=11 // pred_check
        %p310 = pneg %p158
      $region22: #{cvae_forward.1} parent=11 // pred_check_branch
        %312 = sbr.rel (%p310) target = $region24
      $region23: #{cvae_forward.1} parent=11 // pred_region
        _
      $region24: #{cvae_forward.1} parent=11 // pred_fallthru
        _
      // Predicated region
      $region25: #{cvae_forward.1} parent=11 // pred_check
        %p313 = pneg %p179
      $region26: #{cvae_forward.1} parent=11 // pred_check_branch
        %315 = sbr.rel (%p313) target = $region28
      $region27: #{cvae_forward.1} parent=11 // pred_region
        _
      $region28: #{cvae_forward.1} parent=11 // pred_fallthru
        _
      // Predicated region
      $region29: #{cvae_forward.1} parent=11 // pred_check
        %p316 = pneg %p200
      $region30: #{cvae_forward.1} parent=11 // pred_check_branch
        %318 = sbr.rel (%p316) target = $region32
      $region31: #{cvae_forward.1} parent=11 // pred_region
        _
      $region32: #{cvae_forward.1} parent=11 // pred_fallthru
        _
      // Predicated region
      $region33: #{cvae_forward.1} parent=11 // pred_check
        %p319 = pneg %p221
      $region34: #{cvae_forward.1} parent=11 // pred_check_branch
        %321 = sbr.rel (%p319) target = $region36
      $region35: #{cvae_forward.1} parent=11 // pred_region
        _
      $region36: #{cvae_forward.1} parent=11 // pred_fallthru
        _
      // Predicated region
      $region37: #{cvae_forward.1} parent=11 // pred_check
        %p322 = pneg %p242
      $region38: #{cvae_forward.1} parent=11 // pred_check_branch
        %324 = sbr.rel (%p322) target = $region40
      $region39: #{cvae_forward.1} parent=11 // pred_region
        _
      $region40: #{cvae_forward.1} parent=11 // pred_fallthru
        _
      // Predicated region
      $region41: #{cvae_forward.1} parent=11 // pred_check
        %p325 = pneg %p263
      $region42: #{cvae_forward.1} parent=11 // pred_check_branch
        %327 = sbr.rel (%p325) target = $region44
      $region43: #{cvae_forward.1} parent=11 // pred_region
        _
      $region44: #{cvae_forward.1} parent=11 // pred_fallthru
        _
    $region12: #{cvae_forward.1} parent=5 // pred_fallthru
      _
    %p328 = scmp.lt.s32.totalorder %s17, 4
    // Predicated region
    $region45: #{cvae_forward.1} parent=5 // pred_check
      %p329 = pneg %p328
    $region46: #{cvae_forward.1} parent=5 // pred_check_branch
      %331 = sbr.rel (%p329) target = $region48
    $region47: #{cvae_forward.1} parent=5 // pred_region
      // Predicated region
      $region49: #{cvae_forward.1} parent=47 // pred_check
        %p332 = pneg %p37
      $region50: #{cvae_forward.1} parent=47 // pred_check_branch
        %334 = sbr.rel (%p332) target = $region52
      $region51: #{cvae_forward.1} parent=47 // pred_region
        %s335 = smul.u32 16, %s17
        %p336 = scmp.lt.s32.totalorder %s335, 63
        %s337 = scalar_select %p336, %s335, 63
        %s338 = smul.addr %s337, 4
        %s339 = scalar_lea.vmem %s0, %s338
        %s340 = smul.u32 16, %s17
      $region52: #{cvae_forward.1} parent=47 // pred_fallthru
        _
      // Predicated region
      $region53: #{cvae_forward.1} parent=47 // pred_check
        %p341 = pneg %p63
      $region54: #{cvae_forward.1} parent=47 // pred_check_branch
        %343 = sbr.rel (%p341) target = $region56
      $region55: #{cvae_forward.1} parent=47 // pred_region
        %s344 = smul.u32 16, %s17
        %p345 = scmp.lt.s32.totalorder %s344, 63
        %s346 = scalar_select %p345, %s344, 63
        %s347 = smul.addr %s346, 4
        %s348 = scalar_lea.vmem %s1, %s347
        %s349 = smul.u32 16, %s17
      $region56: #{cvae_forward.1} parent=47 // pred_fallthru
        _
      // Predicated region
      $region57: #{cvae_forward.1} parent=47 // pred_check
        %p350 = pneg %p89
      $region58: #{cvae_forward.1} parent=47 // pred_check_branch
        %352 = sbr.rel (%p350) target = $region60
      $region59: #{cvae_forward.1} parent=47 // pred_region
        %s353 = smul.u32 16, %s17
        %p354 = scmp.lt.s32.totalorder %s353, 63
        %s355 = scalar_select %p354, %s353, 63
        %s356 = smul.addr %s355, 8
        %s357 = scalar_lea.vmem %s2, %s356
        %s358 = smul.u32 16, %s17
      $region60: #{cvae_forward.1} parent=47 // pred_fallthru
        _
    $region48: #{cvae_forward.1} parent=5 // pred_fallthru
      _
    %p359 = scmp.le.s32.totalorder 1, %s17
    %p360 = scmp.lt.s32.totalorder %s17, 5
    %p361 = pnand %p359, %p360
    %p362 = pneg %p361
    // Predicated region
    $region61: #{cvae_forward.1} parent=5 // pred_check
      _
    $region62: #{cvae_forward.1} parent=5 // pred_check_branch
      %364 = sbr.rel (%p361) target = $region64
    $region63: #{cvae_forward.1} parent=5 // pred_region
      %s365 = ssub.s32 %s17, 1
      %s366 = smul.u32 16, %s22
      %p367 = scmp.lt.s32.totalorder %s366, 63
      %s368 = scalar_select %p367, %s366, 63
      %s369 = smul.addr %s368, 4
      %s370 = scalar_lea.vmem %s0, %s369
      %p371 = pneg %p43
      %p372 = pneg %p40
      %s373 = smul.u32 16, %s22
      %p374 = scmp.lt.s32.totalorder %s373, 63
      %s375 = scalar_select %p374, %s373, 63
      %s376 = smul.addr %s375, 4
      %s377 = scalar_lea.vmem %s1, %s376
      %p378 = pneg %p69
      %p379 = pneg %p66
      %s380 = smul.u32 16, %s22
      %p381 = scmp.lt.s32.totalorder %s380, 63
      %s382 = scalar_select %p381, %s380, 63
      %s383 = smul.addr %s382, 8
      %s384 = scalar_lea.vmem %s2, %s383
      %p385 = pneg %p95
      %p386 = pneg %p92
      %p387 = pneg %p116
      %p388 = pneg %p113
      %p389 = pneg %p137
      %p390 = pneg %p134
      %p391 = pneg %p158
      %p392 = pneg %p155
      %p393 = pneg %p179
      %p394 = pneg %p176
      %p395 = pneg %p200
      %p396 = pneg %p197
      %p397 = pneg %p221
      %p398 = pneg %p218
      %p399 = pneg %p242
      %p400 = pneg %p239
      %p401 = pneg %p263
      %p402 = pneg %p260
      %p403 = pneg %p289
      %p404 = pneg %p286
      %s405 = smul.u32 16, %s22
      %p406 = scmp.lt.s32.totalorder %s405, 63
      %s407 = scalar_select %p406, %s405, 63
      %s408 = smul.addr %s407, 8
      %s409 = scalar_lea.vmem %s11, %s408
      %s410 = smul.u32 16, %s22
      %p411 = scmp.lt.s32.totalorder %s410, 63
      %s412 = scalar_select %p411, %s410, 63
      %s413 = smul.addr %s412, 4
      %s414 = scalar_lea.vmem %s0, %s413
      %s415 = smul.u32 16, %s22
      %s416 = smul.u32 16, %s22
      %p417 = scmp.lt.s32.totalorder %s416, 63
      %s418 = scalar_select %p417, %s416, 63
      %s419 = smul.addr %s418, 4
      %s420 = scalar_lea.vmem %s1, %s419
      %s421 = smul.u32 16, %s22
      %s422 = smul.u32 16, %s22
      %p423 = scmp.lt.s32.totalorder %s422, 63
      %s424 = scalar_select %p423, %s422, 63
      %s425 = smul.addr %s424, 8
      %s426 = scalar_lea.vmem %s2, %s425
      %s427 = smul.u32 16, %s22
      %s428 = smul.u32 16, %s22
      %p429 = scmp.lt.s32.totalorder %s428, 63
      %s430 = scalar_select %p429, %s428, 63
      %s431 = smul.addr %s430, 8
      %s432 = scalar_lea.vmem %s11, %s431
      %s433 = smul.u32 16, %s22
      %v435 = vld [vmem:[%s414] sm:$0xf]
      %v436 = vld [vmem:[%s414 + $0x4] sm:$0xf]
      %v437 = vld [vmem:[%s414 + $0x8] sm:$0xf]
      %v438 = vld [vmem:[%s414 + $0xc] sm:$0xf]
      %v439 = vld [vmem:[%s414 + $0x10] sm:$0xf]
      %v440 = vld [vmem:[%s414 + $0x14] sm:$0xf]
      %v441 = vld [vmem:[%s414 + $0x18] sm:$0xf]
      %v442 = vld [vmem:[%s414 + $0x1c] sm:$0xf]
      %v443 = vld [vmem:[%s414 + $0x20] sm:$0xf]
      %v444 = vld [vmem:[%s414 + $0x24] sm:$0xf]
      %v445 = vld [vmem:[%s414 + $0x28] sm:$0xf]
      %v446 = vld [vmem:[%s414 + $0x2c] sm:$0xf]
      %v447 = vld [vmem:[%s414 + $0x30] sm:$0xf]
      %v448 = vld [vmem:[%s414 + $0x34] sm:$0xf]
      %v449 = vld [vmem:[%s414 + $0x38] sm:$0xf]
      %v450 = vld [vmem:[%s414 + $0x3c] sm:$0xf]
      %v451 = vld [vmem:[%s3] sm:$0xf]
      %v452 = vld [vmem:[%s3 + $0x4] sm:$0xf]
      %v453 = vld [vmem:[%s3 + $0x8] sm:$0xf]
      %v454 = vld [vmem:[%s3 + $0xc] sm:$0xf]
      %v455 = vld [vmem:[%s420] sm:$0xf]
      %v456 = vld [vmem:[%s420 + $0x4] sm:$0xf]
      %v457 = vld [vmem:[%s420 + $0x8] sm:$0xf]
      %v458 = vld [vmem:[%s420 + $0xc] sm:$0xf]
      %v459 = vld [vmem:[%s420 + $0x10] sm:$0xf]
      %v460 = vld [vmem:[%s420 + $0x14] sm:$0xf]
      %v461 = vld [vmem:[%s420 + $0x18] sm:$0xf]
      %v462 = vld [vmem:[%s420 + $0x1c] sm:$0xf]
      %v463 = vld [vmem:[%s420 + $0x20] sm:$0xf]
      %v464 = vld [vmem:[%s420 + $0x24] sm:$0xf]
      %v465 = vld [vmem:[%s420 + $0x28] sm:$0xf]
      %v466 = vld [vmem:[%s420 + $0x2c] sm:$0xf]
      %v467 = vld [vmem:[%s420 + $0x30] sm:$0xf]
      %v468 = vld [vmem:[%s420 + $0x34] sm:$0xf]
      %v469 = vld [vmem:[%s420 + $0x38] sm:$0xf]
      %v470 = vld [vmem:[%s420 + $0x3c] sm:$0xf]
      %v471 = vld [vmem:[%s4] sm:$0xf]
      %v488 = vunpack.c.l.b16 %v455
      %v489 = vunpack.c.l.b16 %v456
      %v490 = vunpack.c.l.b16 %v457
      %v491 = vunpack.c.l.b16 %v458
      %v492 = vunpack.c.l.b16 %v459
      %v493 = vunpack.c.l.b16 %v460
      %v494 = vunpack.c.l.b16 %v461
      %v495 = vunpack.c.l.b16 %v462
      %v496 = vunpack.c.l.b16 %v463
      %v497 = vunpack.c.l.b16 %v464
      %v498 = vunpack.c.l.b16 %v465
      %v499 = vunpack.c.l.b16 %v466
      %v500 = vunpack.c.l.b16 %v467
      %v501 = vunpack.c.l.b16 %v468
      %v502 = vunpack.c.l.b16 %v469
      %v503 = vunpack.c.l.b16 %v470
      %v504 = vpack.c.b16 %v489, %v488
      %v505 = vpack.c.b16 %v491, %v490
      %v506 = vpack.c.b16 %v493, %v492
      %v507 = vpack.c.b16 %v495, %v494
      %v508 = vpack.c.b16 %v497, %v496
      %v509 = vpack.c.b16 %v499, %v498
      %v510 = vpack.c.b16 %v501, %v500
      %v511 = vpack.c.b16 %v503, %v502
      %vm512 = vcmask 64512
      %v514 = vsel %vm512, %v504, 0
      %v517 = vsel %vm512, %v505, 0
      %v520 = vsel %vm512, %v506, 0
      %v523 = vsel %vm512, %v507, 0
      %v526 = vsel %vm512, %v508, 0
      %v529 = vsel %vm512, %v509, 0
      %v532 = vsel %vm512, %v510, 0
      %v535 = vsel %vm512, %v511, 0
      %vm537 = vcmask 1043456
      %v539 = vsel %vm537, %v471, 0
      %541 = vmatpush.bf16.msra.mxu0 0
      %542 = vmatpush.bf16.msra.mxu0 0
      %543 = vmatpush.bf16.msra.mxu0 0
      %544 = vmatpush.bf16.msra.mxu0 0
      %545 = vmatpush.bf16.msra.mxu0 0
      %546 = vmatpush.bf16.msra.mxu0 0
      %547 = vmatpush.bf16.msra.mxu0 0
      %548 = vmatpush.bf16.msra.mxu0 %v539
      %549 = vmatmul.bf16.gmra.mxu0 %v514
      %v550 = vpop.f32.mrf.mxu0
      %v551 = vadd.f32 0.0, %v550
      %v552 = vpop.f32.mrf.mxu0
      %v553 = vadd.f32 0.0, %v552
      %554 = vmatmul.bf16.gmra.mxu0 %v517
      %v555 = vpop.f32.mrf.mxu0
      %v556 = vadd.f32 0.0, %v555
      %v557 = vpop.f32.mrf.mxu0
      %v558 = vadd.f32 0.0, %v557
      %559 = vmatmul.bf16.gmra.mxu0 %v520
      %v560 = vpop.f32.mrf.mxu0
      %v561 = vadd.f32 0.0, %v560
      %v562 = vpop.f32.mrf.mxu0
      %v563 = vadd.f32 0.0, %v562
      %564 = vmatmul.bf16.gmra.mxu0 %v523
      %v565 = vpop.f32.mrf.mxu0
      %v566 = vadd.f32 0.0, %v565
      %v567 = vpop.f32.mrf.mxu0
      %v568 = vadd.f32 0.0, %v567
      %569 = vmatmul.bf16.gmra.mxu0 %v526
      %v570 = vpop.f32.mrf.mxu0
      %v571 = vadd.f32 0.0, %v570
      %v572 = vpop.f32.mrf.mxu0
      %v573 = vadd.f32 0.0, %v572
      %574 = vmatmul.bf16.gmra.mxu0 %v529
      %v575 = vpop.f32.mrf.mxu0
      %v576 = vadd.f32 0.0, %v575
      %v577 = vpop.f32.mrf.mxu0
      %v578 = vadd.f32 0.0, %v577
      %579 = vmatmul.bf16.gmra.mxu0 %v532
      %v580 = vpop.f32.mrf.mxu0
      %v581 = vadd.f32 0.0, %v580
      %v582 = vpop.f32.mrf.mxu0
      %v583 = vadd.f32 0.0, %v582
      %584 = vmatmul.bf16.gmra.mxu0 %v535
      %v585 = vpop.f32.mrf.mxu0
      %v586 = vadd.f32 0.0, %v585
      %v587 = vpop.f32.mrf.mxu0
      %v588 = vadd.f32 0.0, %v587
      %589 = vdwg.mxu0
      %v606 = vunpack.c.l.b16 %v435
      %v607 = vunpack.c.l.b16 %v436
      %v608 = vunpack.c.l.b16 %v437
      %v609 = vunpack.c.l.b16 %v438
      %v610 = vunpack.c.l.b16 %v439
      %v611 = vunpack.c.l.b16 %v440
      %v612 = vunpack.c.l.b16 %v441
      %v613 = vunpack.c.l.b16 %v442
      %v614 = vunpack.c.l.b16 %v443
      %v615 = vunpack.c.l.b16 %v444
      %v616 = vunpack.c.l.b16 %v445
      %v617 = vunpack.c.l.b16 %v446
      %v618 = vunpack.c.l.b16 %v447
      %v619 = vunpack.c.l.b16 %v448
      %v620 = vunpack.c.l.b16 %v449
      %v621 = vunpack.c.l.b16 %v450
      %v622 = vpack.c.b16 %v607, %v606
      %v623 = vpack.c.b16 %v609, %v608
      %v624 = vpack.c.b16 %v611, %v610
      %v625 = vpack.c.b16 %v613, %v612
      %v626 = vpack.c.b16 %v615, %v614
      %v627 = vpack.c.b16 %v617, %v616
      %v628 = vpack.c.b16 %v619, %v618
      %v629 = vpack.c.b16 %v621, %v620
      %v634 = vunpack.c.l.b16 %v451
      %v635 = vunpack.c.l.b16 %v452
      %v636 = vunpack.c.l.b16 %v453
      %v637 = vunpack.c.l.b16 %v454
      %v638 = vpack.c.b16 %v635, %v634
      %v639 = vpack.c.b16 %v637, %v636
      %vm642 = vcmask 261120
      %v644 = vsel %vm642, %v622, 0
      %v647 = vsel %vm642, %v623, 0
      %v650 = vsel %vm642, %v624, 0
      %v653 = vsel %vm642, %v625, 0
      %v656 = vsel %vm642, %v626, 0
      %v659 = vsel %vm642, %v627, 0
      %v662 = vsel %vm642, %v628, 0
      %v665 = vsel %vm642, %v629, 0
      %667 = vmatpush.bf16.msra.mxu0 0
      %668 = vmatpush.bf16.msra.mxu0 0
      %669 = vmatpush.bf16.msra.mxu0 0
      %670 = vmatpush.bf16.msra.mxu0 0
      %671 = vmatpush.bf16.msra.mxu0 0
      %672 = vmatpush.bf16.msra.mxu0 0
      %673 = vmatpush.bf16.msra.mxu0 %v639
      %674 = vmatpush.bf16.msra.mxu0 %v638
      %675 = vmatmul.bf16.gmra.mxu0 %v644
      %v676 = vpop.f32.mrf.mxu0
      %v677 = vadd.f32 %v551, %v676
      %v678 = vpop.f32.mrf.mxu0
      %v679 = vadd.f32 %v553, %v678
      %680 = vmatmul.bf16.gmra.mxu0 %v647
      %v681 = vpop.f32.mrf.mxu0
      %v682 = vadd.f32 %v556, %v681
      %v683 = vpop.f32.mrf.mxu0
      %v684 = vadd.f32 %v558, %v683
      %685 = vmatmul.bf16.gmra.mxu0 %v650
      %v686 = vpop.f32.mrf.mxu0
      %v687 = vadd.f32 %v561, %v686
      %v688 = vpop.f32.mrf.mxu0
      %v689 = vadd.f32 %v563, %v688
      %690 = vmatmul.bf16.gmra.mxu0 %v653
      %v691 = vpop.f32.mrf.mxu0
      %v692 = vadd.f32 %v566, %v691
      %v693 = vpop.f32.mrf.mxu0
      %v694 = vadd.f32 %v568, %v693
      %695 = vmatmul.bf16.gmra.mxu0 %v656
      %v696 = vpop.f32.mrf.mxu0
      %v697 = vadd.f32 %v571, %v696
      %v698 = vpop.f32.mrf.mxu0
      %v699 = vadd.f32 %v573, %v698
      %700 = vmatmul.bf16.gmra.mxu0 %v659
      %v701 = vpop.f32.mrf.mxu0
      %v702 = vadd.f32 %v576, %v701
      %v703 = vpop.f32.mrf.mxu0
      %v704 = vadd.f32 %v578, %v703
      %705 = vmatmul.bf16.gmra.mxu0 %v662
      %v706 = vpop.f32.mrf.mxu0
      %v707 = vadd.f32 %v581, %v706
      %v708 = vpop.f32.mrf.mxu0
      %v709 = vadd.f32 %v583, %v708
      %710 = vmatmul.bf16.gmra.mxu0 %v665
      %v711 = vpop.f32.mrf.mxu0
      %v712 = vadd.f32 %v586, %v711
      %v713 = vpop.f32.mrf.mxu0
      %v714 = vadd.f32 %v588, %v713
      %715 = vdwg.mxu0
      %v716 = vld [vmem:[%s5] sm:$0x1]
      %v718 = vperm.slane %v716, 0
      %v720 = vadd.f32 %v677, %v718
      %v721 = vadd.f32 %v679, %v718
      %v722 = vadd.f32 %v682, %v718
      %v723 = vadd.f32 %v684, %v718
      %v724 = vadd.f32 %v687, %v718
      %v725 = vadd.f32 %v689, %v718
      %v726 = vadd.f32 %v692, %v718
      %v727 = vadd.f32 %v694, %v718
      %v728 = vadd.f32 %v697, %v718
      %v729 = vadd.f32 %v699, %v718
      %v730 = vadd.f32 %v702, %v718
      %v731 = vadd.f32 %v704, %v718
      %v732 = vadd.f32 %v707, %v718
      %v733 = vadd.f32 %v709, %v718
      %v734 = vadd.f32 %v712, %v718
      %v735 = vadd.f32 %v714, %v718
      %v736 = vpack.c.bf16 %v721, %v720
      %v737 = vpack.c.bf16 %v723, %v722
      %v738 = vpack.c.bf16 %v725, %v724
      %v739 = vpack.c.bf16 %v727, %v726
      %v740 = vpack.c.bf16 %v729, %v728
      %v741 = vpack.c.bf16 %v731, %v730
      %v742 = vpack.c.bf16 %v733, %v732
      %v743 = vpack.c.bf16 %v735, %v734
      %v744 = vld [vmem:[%s6] sm:$0xf]
      %v745 = vld [vmem:[%s6 + $0x4] sm:$0xf]
      %v746 = vld [vmem:[%s6 + $0x8] sm:$0xf]
      %v747 = vld [vmem:[%s6 + $0xc] sm:$0xf]
      %v748 = vld [vmem:[%s6 + $0x10] sm:$0xf]
      %v749 = vld [vmem:[%s6 + $0x14] sm:$0xf]
      %v750 = vld [vmem:[%s6 + $0x18] sm:$0xf]
      %v751 = vld [vmem:[%s6 + $0x1c] sm:$0xf]
      %v752 = vld [vmem:[%s6 + $0x20] sm:$0xf]
      %v753 = vld [vmem:[%s6 + $0x24] sm:$0xf]
      %v754 = vld [vmem:[%s6 + $0x28] sm:$0xf]
      %v755 = vld [vmem:[%s6 + $0x2c] sm:$0xf]
      %v756 = vld [vmem:[%s6 + $0x30] sm:$0xf]
      %v757 = vld [vmem:[%s6 + $0x34] sm:$0xf]
      %v758 = vld [vmem:[%s6 + $0x38] sm:$0xf]
      %v759 = vld [vmem:[%s6 + $0x3c] sm:$0xf]
      %v760 = vld [vmem:[%s7] sm:$0x1]
      %v762 = vperm.slane %v760, 0
      %v780 = vunpack.c.l.b16 %v744
      %v781 = vunpack.c.l.b16 %v745
      %v782 = vunpack.c.l.b16 %v746
      %v783 = vunpack.c.l.b16 %v747
      %v784 = vunpack.c.l.b16 %v748
      %v785 = vunpack.c.l.b16 %v749
      %v786 = vunpack.c.l.b16 %v750
      %v787 = vunpack.c.l.b16 %v751
      %v788 = vunpack.c.l.b16 %v752
      %v789 = vunpack.c.l.b16 %v753
      %v790 = vunpack.c.l.b16 %v754
      %v791 = vunpack.c.l.b16 %v755
      %v792 = vunpack.c.l.b16 %v756
      %v793 = vunpack.c.l.b16 %v757
      %v794 = vunpack.c.l.b16 %v758
      %v795 = vunpack.c.l.b16 %v759
      %v796 = vpack.c.b16 %v781, %v780
      %v797 = vpack.c.b16 %v783, %v782
      %v798 = vpack.c.b16 %v785, %v784
      %v799 = vpack.c.b16 %v787, %v786
      %v800 = vpack.c.b16 %v789, %v788
      %v801 = vpack.c.b16 %v791, %v790
      %v802 = vpack.c.b16 %v793, %v792
      %v803 = vpack.c.b16 %v795, %v794
      %812 = vmatpush.bf16.msra.mxu0 %v803
      %813 = vmatpush.bf16.msra.mxu0 %v802
      %814 = vmatpush.bf16.msra.mxu0 %v801
      %815 = vmatpush.bf16.msra.mxu0 %v800
      %816 = vmatpush.bf16.msra.mxu0 %v799
      %817 = vmatpush.bf16.msra.mxu0 %v798
      %818 = vmatpush.bf16.msra.mxu0 %v797
      %819 = vmatpush.bf16.msra.mxu0 %v796
      %820 = vmatmul.bf16.gmra.mxu0 %v736
      %v821 = vpop.f32.mrf.mxu0
      %v822 = vadd.f32 %v762, %v821
      %v823 = vpop.f32.mrf.mxu0
      %v824 = vadd.f32 %v762, %v823
      %825 = vmatmul.bf16.gmra.mxu0 %v737
      %v826 = vpop.f32.mrf.mxu0
      %v827 = vadd.f32 %v762, %v826
      %v828 = vpop.f32.mrf.mxu0
      %v829 = vadd.f32 %v762, %v828
      %830 = vmatmul.bf16.gmra.mxu0 %v738
      %v831 = vpop.f32.mrf.mxu0
      %v832 = vadd.f32 %v762, %v831
      %v833 = vpop.f32.mrf.mxu0
      %v834 = vadd.f32 %v762, %v833
      %835 = vmatmul.bf16.gmra.mxu0 %v739
      %v836 = vpop.f32.mrf.mxu0
      %v837 = vadd.f32 %v762, %v836
      %v838 = vpop.f32.mrf.mxu0
      %v839 = vadd.f32 %v762, %v838
      %840 = vmatmul.bf16.gmra.mxu0 %v740
      %v841 = vpop.f32.mrf.mxu0
      %v842 = vadd.f32 %v762, %v841
      %v843 = vpop.f32.mrf.mxu0
      %v844 = vadd.f32 %v762, %v843
      %845 = vmatmul.bf16.gmra.mxu0 %v741
      %v846 = vpop.f32.mrf.mxu0
      %v847 = vadd.f32 %v762, %v846
      %v848 = vpop.f32.mrf.mxu0
      %v849 = vadd.f32 %v762, %v848
      %850 = vmatmul.bf16.gmra.mxu0 %v742
      %v851 = vpop.f32.mrf.mxu0
      %v852 = vadd.f32 %v762, %v851
      %v853 = vpop.f32.mrf.mxu0
      %v854 = vadd.f32 %v762, %v853
      %855 = vmatmul.bf16.gmra.mxu0 %v743
      %v856 = vpop.f32.mrf.mxu0
      %v857 = vadd.f32 %v762, %v856
      %v858 = vpop.f32.mrf.mxu0
      %v859 = vadd.f32 %v762, %v858
      %860 = vdwg.mxu0
      %v861 = vld [vmem:[%s426] sm:$0xff]
      %v862 = vld [vmem:[%s426 + $0x8] sm:$0xff]
      %v863 = vld [vmem:[%s426 + $0x10] sm:$0xff]
      %v864 = vld [vmem:[%s426 + $0x18] sm:$0xff]
      %v865 = vld [vmem:[%s426 + $0x20] sm:$0xff]
      %v866 = vld [vmem:[%s426 + $0x28] sm:$0xff]
      %v867 = vld [vmem:[%s426 + $0x30] sm:$0xff]
      %v868 = vld [vmem:[%s426 + $0x38] sm:$0xff]
      %v869 = vld [vmem:[%s426 + $0x40] sm:$0xff]
      %v870 = vld [vmem:[%s426 + $0x48] sm:$0xff]
      %v871 = vld [vmem:[%s426 + $0x50] sm:$0xff]
      %v872 = vld [vmem:[%s426 + $0x58] sm:$0xff]
      %v873 = vld [vmem:[%s426 + $0x60] sm:$0xff]
      %v874 = vld [vmem:[%s426 + $0x68] sm:$0xff]
      %v875 = vld [vmem:[%s426 + $0x70] sm:$0xff]
      %v876 = vld [vmem:[%s426 + $0x78] sm:$0xff]
      %v877 = vmul.f32 %v822, 0.5
      %v878 = vmul.f32 %v824, 0.5
      %v879 = vmul.f32 %v827, 0.5
      %v880 = vmul.f32 %v829, 0.5
      %v881 = vmul.f32 %v832, 0.5
      %v882 = vmul.f32 %v834, 0.5
      %v883 = vmul.f32 %v837, 0.5
      %v884 = vmul.f32 %v839, 0.5
      %v885 = vmul.f32 %v842, 0.5
      %v886 = vmul.f32 %v844, 0.5
      %v887 = vmul.f32 %v847, 0.5
      %v888 = vmul.f32 %v849, 0.5
      %v889 = vmul.f32 %v852, 0.5
      %v890 = vmul.f32 %v854, 0.5
      %v891 = vmul.f32 %v857, 0.5
      %v892 = vmul.f32 %v859, 0.5
      %v893 = vmul.f32 %v877, 1.442695
      %v894 = vpow.pop %v893
      %v895 = vmul.f32 %v878, 1.442695
      %v896 = vpow.pop %v895
      %v897 = vmul.f32 %v879, 1.442695
      %v898 = vpow.pop %v897
      %v899 = vmul.f32 %v880, 1.442695
      %v900 = vpow.pop %v899
      %v901 = vmul.f32 %v881, 1.442695
      %v902 = vpow.pop %v901
      %v903 = vmul.f32 %v882, 1.442695
      %v904 = vpow.pop %v903
      %v905 = vmul.f32 %v883, 1.442695
      %v906 = vpow.pop %v905
      %v907 = vmul.f32 %v884, 1.442695
      %v908 = vpow.pop %v907
      %v909 = vmul.f32 %v885, 1.442695
      %v910 = vpow.pop %v909
      %v911 = vmul.f32 %v886, 1.442695
      %v912 = vpow.pop %v911
      %v913 = vmul.f32 %v887, 1.442695
      %v914 = vpow.pop %v913
      %v915 = vmul.f32 %v888, 1.442695
      %v916 = vpow.pop %v915
      %v917 = vmul.f32 %v889, 1.442695
      %v918 = vpow.pop %v917
      %v919 = vmul.f32 %v890, 1.442695
      %v920 = vpow.pop %v919
      %v921 = vmul.f32 %v891, 1.442695
      %v922 = vpow.pop %v921
      %v923 = vmul.f32 %v892, 1.442695
      %v924 = vpow.pop %v923
      %941 = vrot.lane.b32.xlu0 %v894, 112
      %v942 = vpop.permute.xlu0 %941
      %943 = vrot.lane.b32.xlu0 %v896, 112
      %v944 = vpop.permute.xlu0 %943
      %945 = vrot.lane.b32.xlu0 %v898, 112
      %v946 = vpop.permute.xlu0 %945
      %947 = vrot.lane.b32.xlu0 %v900, 112
      %v948 = vpop.permute.xlu0 %947
      %949 = vrot.lane.b32.xlu0 %v902, 112
      %v950 = vpop.permute.xlu0 %949
      %951 = vrot.lane.b32.xlu0 %v904, 112
      %v952 = vpop.permute.xlu0 %951
      %953 = vrot.lane.b32.xlu0 %v906, 112
      %v954 = vpop.permute.xlu0 %953
      %955 = vrot.lane.b32.xlu0 %v908, 112
      %v956 = vpop.permute.xlu0 %955
      %957 = vrot.lane.b32.xlu0 %v910, 112
      %v958 = vpop.permute.xlu0 %957
      %959 = vrot.lane.b32.xlu0 %v912, 112
      %v960 = vpop.permute.xlu0 %959
      %961 = vrot.lane.b32.xlu0 %v914, 112
      %v962 = vpop.permute.xlu0 %961
      %963 = vrot.lane.b32.xlu0 %v916, 112
      %v964 = vpop.permute.xlu0 %963
      %965 = vrot.lane.b32.xlu0 %v918, 112
      %v966 = vpop.permute.xlu0 %965
      %967 = vrot.lane.b32.xlu0 %v920, 112
      %v968 = vpop.permute.xlu0 %967
      %969 = vrot.lane.b32.xlu0 %v922, 112
      %v970 = vpop.permute.xlu0 %969
      %971 = vrot.lane.b32.xlu0 %v924, 112
      %v972 = vpop.permute.xlu0 %971
      %v989 = vmul.f32 %v861, %v942
      %v990 = vmul.f32 %v862, %v944
      %v991 = vmul.f32 %v863, %v946
      %v992 = vmul.f32 %v864, %v948
      %v993 = vmul.f32 %v865, %v950
      %v994 = vmul.f32 %v866, %v952
      %v995 = vmul.f32 %v867, %v954
      %v996 = vmul.f32 %v868, %v956
      %v997 = vmul.f32 %v869, %v958
      %v998 = vmul.f32 %v870, %v960
      %v999 = vmul.f32 %v871, %v962
      %v1000 = vmul.f32 %v872, %v964
      %v1001 = vmul.f32 %v873, %v966
      %v1002 = vmul.f32 %v874, %v968
      %v1003 = vmul.f32 %v875, %v970
      %v1004 = vmul.f32 %v876, %v972
      %v1005 = vadd.f32 %v822, %v989
      %v1006 = vadd.f32 %v824, %v990
      %v1007 = vadd.f32 %v827, %v991
      %v1008 = vadd.f32 %v829, %v992
      %v1009 = vadd.f32 %v832, %v993
      %v1010 = vadd.f32 %v834, %v994
      %v1011 = vadd.f32 %v837, %v995
      %v1012 = vadd.f32 %v839, %v996
      %v1013 = vadd.f32 %v842, %v997
      %v1014 = vadd.f32 %v844, %v998
      %v1015 = vadd.f32 %v847, %v999
      %v1016 = vadd.f32 %v849, %v1000
      %v1017 = vadd.f32 %v852, %v1001
      %v1018 = vadd.f32 %v854, %v1002
      %v1019 = vadd.f32 %v857, %v1003
      %v1020 = vadd.f32 %v859, %v1004
      %v1021 = vpack.c.bf16 %v1006, %v1005
      %v1022 = vpack.c.bf16 %v1008, %v1007
      %v1023 = vpack.c.bf16 %v1010, %v1009
      %v1024 = vpack.c.bf16 %v1012, %v1011
      %v1025 = vpack.c.bf16 %v1014, %v1013
      %v1026 = vpack.c.bf16 %v1016, %v1015
      %v1027 = vpack.c.bf16 %v1018, %v1017
      %v1028 = vpack.c.bf16 %v1020, %v1019
      %v1029 = vld [vmem:[%s8] sm:$0xf]
      %v1030 = vld [vmem:[%s8 + $0x4] sm:$0xf]
      %v1033 = vunpack.c.l.b16 %v1029
      %v1034 = vunpack.c.l.b16 %v1030
      %v1035 = vpack.c.b16 %v1034, %v1033
      %vm1037 = vcmask 130048
      %v1039 = vsel %vm1037, %v1021, 0
      %v1042 = vsel %vm1037, %v1022, 0
      %v1045 = vsel %vm1037, %v1023, 0
      %v1048 = vsel %vm1037, %v1024, 0
      %v1051 = vsel %vm1037, %v1025, 0
      %v1054 = vsel %vm1037, %v1026, 0
      %v1057 = vsel %vm1037, %v1027, 0
      %v1060 = vsel %vm1037, %v1028, 0
      %1062 = vmatpush.bf16.msra.mxu0 0
      %1063 = vmatpush.bf16.msra.mxu0 0
      %1064 = vmatpush.bf16.msra.mxu0 0
      %1065 = vmatpush.bf16.msra.mxu0 0
      %1066 = vmatpush.bf16.msra.mxu0 0
      %1067 = vmatpush.bf16.msra.mxu0 0
      %1068 = vmatpush.bf16.msra.mxu0 0
      %1069 = vmatpush.bf16.msra.mxu0 %v1035
      %1070 = vmatmul.bf16.gmra.mxu0 %v1039
      %v1071 = vpop.f32.mrf.mxu0
      %v1072 = vadd.f32 %v720, %v1071
      %v1073 = vpop.f32.mrf.mxu0
      %v1074 = vadd.f32 %v721, %v1073
      %1075 = vmatmul.bf16.gmra.mxu0 %v1042
      %v1076 = vpop.f32.mrf.mxu0
      %v1077 = vadd.f32 %v722, %v1076
      %v1078 = vpop.f32.mrf.mxu0
      %v1079 = vadd.f32 %v723, %v1078
      %1080 = vmatmul.bf16.gmra.mxu0 %v1045
      %v1081 = vpop.f32.mrf.mxu0
      %v1082 = vadd.f32 %v724, %v1081
      %v1083 = vpop.f32.mrf.mxu0
      %v1084 = vadd.f32 %v725, %v1083
      %1085 = vmatmul.bf16.gmra.mxu0 %v1048
      %v1086 = vpop.f32.mrf.mxu0
      %v1087 = vadd.f32 %v726, %v1086
      %v1088 = vpop.f32.mrf.mxu0
      %v1089 = vadd.f32 %v727, %v1088
      %1090 = vmatmul.bf16.gmra.mxu0 %v1051
      %v1091 = vpop.f32.mrf.mxu0
      %v1092 = vadd.f32 %v728, %v1091
      %v1093 = vpop.f32.mrf.mxu0
      %v1094 = vadd.f32 %v729, %v1093
      %1095 = vmatmul.bf16.gmra.mxu0 %v1054
      %v1096 = vpop.f32.mrf.mxu0
      %v1097 = vadd.f32 %v730, %v1096
      %v1098 = vpop.f32.mrf.mxu0
      %v1099 = vadd.f32 %v731, %v1098
      %1100 = vmatmul.bf16.gmra.mxu0 %v1057
      %v1101 = vpop.f32.mrf.mxu0
      %v1102 = vadd.f32 %v732, %v1101
      %v1103 = vpop.f32.mrf.mxu0
      %v1104 = vadd.f32 %v733, %v1103
      %1105 = vmatmul.bf16.gmra.mxu0 %v1060
      %v1106 = vpop.f32.mrf.mxu0
      %v1107 = vadd.f32 %v734, %v1106
      %v1108 = vpop.f32.mrf.mxu0
      %v1109 = vadd.f32 %v735, %v1108
      %1110 = vdwg.mxu0
      %v1111 = vpack.c.bf16 %v1074, %v1072
      %v1112 = vpack.c.bf16 %v1079, %v1077
      %v1113 = vpack.c.bf16 %v1084, %v1082
      %v1114 = vpack.c.bf16 %v1089, %v1087
      %v1115 = vpack.c.bf16 %v1094, %v1092
      %v1116 = vpack.c.bf16 %v1099, %v1097
      %v1117 = vpack.c.bf16 %v1104, %v1102
      %v1118 = vpack.c.bf16 %v1109, %v1107
      %v1119 = vld [vmem:[%s9] sm:$0xf]
      %v1120 = vld [vmem:[%s9 + $0x4] sm:$0xf]
      %v1121 = vld [vmem:[%s9 + $0x8] sm:$0xf]
      %v1122 = vld [vmem:[%s9 + $0xc] sm:$0xf]
      %v1123 = vld [vmem:[%s9 + $0x10] sm:$0xf]
      %v1124 = vld [vmem:[%s9 + $0x14] sm:$0xf]
      %v1125 = vld [vmem:[%s9 + $0x18] sm:$0xf]
      %v1126 = vld [vmem:[%s9 + $0x1c] sm:$0xf]
      %v1127 = vld [vmem:[%s10] sm:$0x1]
      %v1129 = vperm.slane %v1127, 0
      %v1139 = vunpack.c.l.b16 %v1119
      %v1140 = vunpack.c.l.b16 %v1120
      %v1141 = vunpack.c.l.b16 %v1121
      %v1142 = vunpack.c.l.b16 %v1122
      %v1143 = vunpack.c.l.b16 %v1123
      %v1144 = vunpack.c.l.b16 %v1124
      %v1145 = vunpack.c.l.b16 %v1125
      %v1146 = vunpack.c.l.b16 %v1126
      %v1147 = vpack.c.b16 %v1140, %v1139
      %v1148 = vpack.c.b16 %v1142, %v1141
      %v1149 = vpack.c.b16 %v1144, %v1143
      %v1150 = vpack.c.b16 %v1146, %v1145
      %vm1155 = vcmask 523264
      %v1157 = vsel %vm1155, %v1111, 0
      %v1160 = vsel %vm1155, %v1112, 0
      %v1163 = vsel %vm1155, %v1113, 0
      %v1166 = vsel %vm1155, %v1114, 0
      %v1169 = vsel %vm1155, %v1115, 0
      %v1172 = vsel %vm1155, %v1116, 0
      %v1175 = vsel %vm1155, %v1117, 0
      %v1178 = vsel %vm1155, %v1118, 0
      %1180 = vmatpush.bf16.msra.mxu0 0
      %1181 = vmatpush.bf16.msra.mxu0 0
      %1182 = vmatpush.bf16.msra.mxu0 0
      %1183 = vmatpush.bf16.msra.mxu0 0
      %1184 = vmatpush.bf16.msra.mxu0 %v1150
      %1185 = vmatpush.bf16.msra.mxu0 %v1149
      %1186 = vmatpush.bf16.msra.mxu0 %v1148
      %1187 = vmatpush.bf16.msra.mxu0 %v1147
      %1188 = vmatmul.bf16.gmra.mxu0 %v1157
      %v1189 = vpop.f32.mrf.mxu0
      %v1190 = vadd.f32 %v1129, %v1189
      %v1191 = vpop.f32.mrf.mxu0
      %v1192 = vadd.f32 %v1129, %v1191
      %1193 = vmatmul.bf16.gmra.mxu0 %v1160
      %v1194 = vpop.f32.mrf.mxu0
      %v1195 = vadd.f32 %v1129, %v1194
      %v1196 = vpop.f32.mrf.mxu0
      %v1197 = vadd.f32 %v1129, %v1196
      %1198 = vmatmul.bf16.gmra.mxu0 %v1163
      %v1199 = vpop.f32.mrf.mxu0
      %v1200 = vadd.f32 %v1129, %v1199
      %v1201 = vpop.f32.mrf.mxu0
      %v1202 = vadd.f32 %v1129, %v1201
      %1203 = vmatmul.bf16.gmra.mxu0 %v1166
      %v1204 = vpop.f32.mrf.mxu0
      %v1205 = vadd.f32 %v1129, %v1204
      %v1206 = vpop.f32.mrf.mxu0
      %v1207 = vadd.f32 %v1129, %v1206
      %1208 = vmatmul.bf16.gmra.mxu0 %v1169
      %v1209 = vpop.f32.mrf.mxu0
      %v1210 = vadd.f32 %v1129, %v1209
      %v1211 = vpop.f32.mrf.mxu0
      %v1212 = vadd.f32 %v1129, %v1211
      %1213 = vmatmul.bf16.gmra.mxu0 %v1172
      %v1214 = vpop.f32.mrf.mxu0
      %v1215 = vadd.f32 %v1129, %v1214
      %v1216 = vpop.f32.mrf.mxu0
      %v1217 = vadd.f32 %v1129, %v1216
      %1218 = vmatmul.bf16.gmra.mxu0 %v1175
      %v1219 = vpop.f32.mrf.mxu0
      %v1220 = vadd.f32 %v1129, %v1219
      %v1221 = vpop.f32.mrf.mxu0
      %v1222 = vadd.f32 %v1129, %v1221
      %1223 = vmatmul.bf16.gmra.mxu0 %v1178
      %v1224 = vpop.f32.mrf.mxu0
      %v1225 = vadd.f32 %v1129, %v1224
      %v1226 = vpop.f32.mrf.mxu0
      %v1227 = vadd.f32 %v1129, %v1226
      %1228 = vdwg.mxu0
      %1245 = vrot.lane.b32.xlu0 %v822, 32
      %v1246 = vpop.permute.xlu0 %1245
      %1247 = vrot.lane.b32.xlu0 %v824, 32
      %v1248 = vpop.permute.xlu0 %1247
      %1249 = vrot.lane.b32.xlu0 %v827, 32
      %v1250 = vpop.permute.xlu0 %1249
      %1251 = vrot.lane.b32.xlu0 %v829, 32
      %v1252 = vpop.permute.xlu0 %1251
      %1253 = vrot.lane.b32.xlu0 %v832, 32
      %v1254 = vpop.permute.xlu0 %1253
      %1255 = vrot.lane.b32.xlu0 %v834, 32
      %v1256 = vpop.permute.xlu0 %1255
      %1257 = vrot.lane.b32.xlu0 %v837, 32
      %v1258 = vpop.permute.xlu0 %1257
      %1259 = vrot.lane.b32.xlu0 %v839, 32
      %v1260 = vpop.permute.xlu0 %1259
      %1261 = vrot.lane.b32.xlu0 %v842, 32
      %v1262 = vpop.permute.xlu0 %1261
      %1263 = vrot.lane.b32.xlu0 %v844, 32
      %v1264 = vpop.permute.xlu0 %1263
      %1265 = vrot.lane.b32.xlu0 %v847, 32
      %v1266 = vpop.permute.xlu0 %1265
      %1267 = vrot.lane.b32.xlu0 %v849, 32
      %v1268 = vpop.permute.xlu0 %1267
      %1269 = vrot.lane.b32.xlu0 %v852, 32
      %v1270 = vpop.permute.xlu0 %1269
      %1271 = vrot.lane.b32.xlu0 %v854, 32
      %v1272 = vpop.permute.xlu0 %1271
      %1273 = vrot.lane.b32.xlu0 %v857, 32
      %v1274 = vpop.permute.xlu0 %1273
      %1275 = vrot.lane.b32.xlu0 %v859, 32
      %v1276 = vpop.permute.xlu0 %1275
      %1309 = vrot.lane.b32.xlu0 %v1005, 64
      %v1310 = vpop.permute.xlu0 %1309
      %1311 = vrot.lane.b32.xlu0 %v1006, 64
      %v1312 = vpop.permute.xlu0 %1311
      %1313 = vrot.lane.b32.xlu0 %v1007, 64
      %v1314 = vpop.permute.xlu0 %1313
      %1315 = vrot.lane.b32.xlu0 %v1008, 64
      %v1316 = vpop.permute.xlu0 %1315
      %1317 = vrot.lane.b32.xlu0 %v1009, 64
      %v1318 = vpop.permute.xlu0 %1317
      %1319 = vrot.lane.b32.xlu0 %v1010, 64
      %v1320 = vpop.permute.xlu0 %1319
      %1321 = vrot.lane.b32.xlu0 %v1011, 64
      %v1322 = vpop.permute.xlu0 %1321
      %1323 = vrot.lane.b32.xlu0 %v1012, 64
      %v1324 = vpop.permute.xlu0 %1323
      %1325 = vrot.lane.b32.xlu0 %v1013, 64
      %v1326 = vpop.permute.xlu0 %1325
      %1327 = vrot.lane.b32.xlu0 %v1014, 64
      %v1328 = vpop.permute.xlu0 %1327
      %1329 = vrot.lane.b32.xlu0 %v1015, 64
      %v1330 = vpop.permute.xlu0 %1329
      %1331 = vrot.lane.b32.xlu0 %v1016, 64
      %v1332 = vpop.permute.xlu0 %1331
      %1333 = vrot.lane.b32.xlu0 %v1017, 64
      %v1334 = vpop.permute.xlu0 %1333
      %1335 = vrot.lane.b32.xlu0 %v1018, 64
      %v1336 = vpop.permute.xlu0 %1335
      %1337 = vrot.lane.b32.xlu0 %v1019, 64
      %v1338 = vpop.permute.xlu0 %1337
      %1339 = vrot.lane.b32.xlu0 %v1020, 64
      %v1340 = vpop.permute.xlu0 %1339
      %v1357 = vsel %vm642, %v1190, %v1246
      %v1358 = vsel %vm642, %v1192, %v1248
      %v1359 = vsel %vm642, %v1195, %v1250
      %v1360 = vsel %vm642, %v1197, %v1252
      %v1361 = vsel %vm642, %v1200, %v1254
      %v1362 = vsel %vm642, %v1202, %v1256
      %v1363 = vsel %vm642, %v1205, %v1258
      %v1364 = vsel %vm642, %v1207, %v1260
      %v1365 = vsel %vm642, %v1210, %v1262
      %v1366 = vsel %vm642, %v1212, %v1264
      %v1367 = vsel %vm642, %v1215, %v1266
      %v1368 = vsel %vm642, %v1217, %v1268
      %v1369 = vsel %vm642, %v1220, %v1270
      %v1370 = vsel %vm642, %v1222, %v1272
      %v1371 = vsel %vm642, %v1225, %v1274
      %v1372 = vsel %vm642, %v1227, %v1276
      %v1373 = vsel %vm1155, %v1357, %v1310
      %v1374 = vsel %vm1155, %v1358, %v1312
      %v1375 = vsel %vm1155, %v1359, %v1314
      %v1376 = vsel %vm1155, %v1360, %v1316
      %v1377 = vsel %vm1155, %v1361, %v1318
      %v1378 = vsel %vm1155, %v1362, %v1320
      %v1379 = vsel %vm1155, %v1363, %v1322
      %v1380 = vsel %vm1155, %v1364, %v1324
      %v1381 = vsel %vm1155, %v1365, %v1326
      %v1382 = vsel %vm1155, %v1366, %v1328
      %v1383 = vsel %vm1155, %v1367, %v1330
      %v1384 = vsel %vm1155, %v1368, %v1332
      %v1385 = vsel %vm1155, %v1369, %v1334
      %v1386 = vsel %vm1155, %v1370, %v1336
      %v1387 = vsel %vm1155, %v1371, %v1338
      %v1388 = vsel %vm1155, %v1372, %v1340
      %vm1389 = vcmask 654336
      %v1390 = vsel %vm1389, %v1373, 0.0
      %v1391 = vsel %vm1389, %v1374, 0.0
      %v1392 = vsel %vm1389, %v1375, 0.0
      %v1393 = vsel %vm1389, %v1376, 0.0
      %v1394 = vsel %vm1389, %v1377, 0.0
      %v1395 = vsel %vm1389, %v1378, 0.0
      %v1396 = vsel %vm1389, %v1379, 0.0
      %v1397 = vsel %vm1389, %v1380, 0.0
      %v1398 = vsel %vm1389, %v1381, 0.0
      %v1399 = vsel %vm1389, %v1382, 0.0
      %v1400 = vsel %vm1389, %v1383, 0.0
      %v1401 = vsel %vm1389, %v1384, 0.0
      %v1402 = vsel %vm1389, %v1385, 0.0
      %v1403 = vsel %vm1389, %v1386, 0.0
      %v1404 = vsel %vm1389, %v1387, 0.0
      %v1405 = vsel %vm1389, %v1388, 0.0
      %1406 = vst [vmem:[%s432] sm:$0xff] %v1390
      %1407 = vst [vmem:[%s432 + $0x8] sm:$0xff] %v1391
      %1408 = vst [vmem:[%s432 + $0x10] sm:$0xff] %v1392
      %1409 = vst [vmem:[%s432 + $0x18] sm:$0xff] %v1393
      %1410 = vst [vmem:[%s432 + $0x20] sm:$0xff] %v1394
      %1411 = vst [vmem:[%s432 + $0x28] sm:$0xff] %v1395
      %1412 = vst [vmem:[%s432 + $0x30] sm:$0xff] %v1396
      %1413 = vst [vmem:[%s432 + $0x38] sm:$0xff] %v1397
      %1414 = vst [vmem:[%s432 + $0x40] sm:$0xff] %v1398
      %1415 = vst [vmem:[%s432 + $0x48] sm:$0xff] %v1399
      %1416 = vst [vmem:[%s432 + $0x50] sm:$0xff] %v1400
      %1417 = vst [vmem:[%s432 + $0x58] sm:$0xff] %v1401
      %1418 = vst [vmem:[%s432 + $0x60] sm:$0xff] %v1402
      %1419 = vst [vmem:[%s432 + $0x68] sm:$0xff] %v1403
      %1420 = vst [vmem:[%s432 + $0x70] sm:$0xff] %v1404
      %1421 = vst [vmem:[%s432 + $0x78] sm:$0xff] %v1405
      %s1422 = smul.u32 16, %s22
      %p1423 = scmp.lt.s32.totalorder %s1422, 63
      %s1424 = scalar_select %p1423, %s1422, 63
      %s1425 = smul.addr %s1424, 8
      %s1426 = scalar_lea.vmem %s11, %s1425
      // Predicated region
      $region65: #{cvae_forward.1} parent=63 // pred_check
        %p1427 = pneg %p286
      $region66: #{cvae_forward.1} parent=63 // pred_check_branch
        %1429 = sbr.rel (%p1427) target = $region68
      $region67: #{cvae_forward.1} parent=63 // pred_region
        %s1430 = smul.u32 16, %s22
      $region68: #{cvae_forward.1} parent=63 // pred_fallthru
        _
    $region64: #{cvae_forward.1} parent=5 // pred_fallthru
      _
    %p1431 = scmp.le.s32.totalorder 2, %s17
    // Predicated region
    $region69: #{cvae_forward.1} parent=5 // pred_check
      %p1432 = pneg %p1431
    $region70: #{cvae_forward.1} parent=5 // pred_check_branch
      %1434 = sbr.rel (%p1432) target = $region72
    $region71: #{cvae_forward.1} parent=5 // pred_region
      %s1435 = ssub.s32 %s17, 2
      // Predicated region
      $region73: #{cvae_forward.1} parent=71 // pred_check
        %p1436 = pneg %p292
      $region74: #{cvae_forward.1} parent=71 // pred_check_branch
        %1438 = sbr.rel (%p1436) target = $region76
      $region75: #{cvae_forward.1} parent=71 // pred_region
        %s1439 = smul.u32 16, %s23
        %p1440 = scmp.lt.s32.totalorder %s1439, 63
        %s1441 = scalar_select %p1440, %s1439, 63
        %s1442 = smul.addr %s1441, 8
        %s1443 = scalar_lea.vmem %s11, %s1442
      $region76: #{cvae_forward.1} parent=71 // pred_fallthru
        _
    $region72: #{cvae_forward.1} parent=5 // pred_fallthru
      _
  $region6: #{cvae_forward.1} parent=0 // loop_footer
    %s21 = sadd.s32 1, %s17
  $region7: #{cvae_forward.1} parent=0 // loop_footer_branch
    %16 = sbr.rel target = $region3
  $region8: #{cvae_forward.1} parent=0 // loop_exit
    _

</llo_original>
